<compile_context>
chip_gen: v6e
topology: v6e:2x2x1
jax: 0.10.0
libtpu: 0.0.40
codegen_flags: <defaults>
</compile_context>

<pallas_src>
import functools

import jax
import jax.numpy as jnp
from jax import lax
from jax.experimental import pallas as pl
from jax.experimental.pallas import tpu as pltpu


def _cdiv(a, b):
    return -(-a // b)


def _round_up(a, b):
    return _cdiv(a, b) * b


def _dice_kernel(pred_ref, tgt_ref, loss_ref, a_sc, b_sc, c_sc, *,
                 eps, activate, d, sub, n_sub, n_chunks, binary_target,
                 needs_mask):
    """pred_ref/tgt_ref: (1, S, 128) blocks; loss_ref: (1, 8, 128) per-sample.

    a_sc/b_sc/c_sc: (8, 128) f32 accumulators for sum(p*t), sum(p*p), sum(t*t).
    """
    k = pl.program_id(1)
    s_rows = sub * n_sub                       # rows per grid chunk
    full_rows = d // 128                       # fully-valid 128-lane rows
    rem = d % 128                              # valid lanes in the partial row

    @pl.when(k == 0)
    def _():
        a_sc[...] = jnp.zeros_like(a_sc)
        b_sc[...] = jnp.zeros_like(b_sc)
        c_sc[...] = jnp.zeros_like(c_sc)

    def accumulate(masked):
        zero = jnp.zeros((8, 128), jnp.float32)

        def body(i, carry):
            a_acc, b_acc, c_acc = carry
            off = i * sub
            if not isinstance(off, int):
                off = pl.multiple_of(off, sub)
            p = pred_ref[0, pl.ds(off, sub), :].astype(jnp.float32)
            t = tgt_ref[0, pl.ds(off, sub), :].astype(jnp.float32)
            if activate:
                # sigmoid(x) == 0.5 * tanh(0.5*x) + 0.5  (single EUP op/elem)
                p = 0.5 * jnp.tanh(0.5 * p) + 0.5
            if masked:
                grow = (k * s_rows + off
                        + lax.broadcasted_iota(jnp.int32, (sub, 128), 0))
                if rem == 0:
                    keep = grow < full_rows
                else:
                    lane = lax.broadcasted_iota(jnp.int32, (sub, 128), 1)
                    keep = (grow < full_rows) | ((grow == full_rows) & (lane < rem))
                p = jnp.where(keep, p, 0.0)
                t = jnp.where(keep, t, 0.0)
            # Fold sub-tile into (sub//8, 8, 128) and add vregs elementwise
            # (VPU-only); cross-lane reduction deferred to the finalize step.
            a_acc = a_acc + jnp.sum((p * t).reshape(sub // 8, 8, 128), axis=0)
            b_acc = b_acc + jnp.sum((p * p).reshape(sub // 8, 8, 128), axis=0)
            if binary_target:
                # integer/bool masks: t*t == t -> skip one multiply per element
                c_acc = c_acc + jnp.sum(t.reshape(sub // 8, 8, 128), axis=0)
            else:
                c_acc = c_acc + jnp.sum((t * t).reshape(sub // 8, 8, 128), axis=0)
            return a_acc, b_acc, c_acc

        if n_sub == 1:
            a, b, c = body(0, (zero, zero, zero))
        else:
            a, b, c = lax.fori_loop(0, n_sub, body, (zero, zero, zero),
                                    unroll=min(n_sub, 4))
        a_sc[...] += a
        b_sc[...] += b
        c_sc[...] += c

    if not needs_mask:
        accumulate(False)
    elif n_chunks == 1:
        accumulate(True)
    else:
        @pl.when(k < n_chunks - 1)
        def _():
            accumulate(False)

        @pl.when(k == n_chunks - 1)
        def _():
            accumulate(True)

    @pl.when(k == n_chunks - 1)
    def _():
        def full_sum(x):  # (8, 128) -> (1, 1)
            return jnp.sum(x, axis=1, keepdims=True).sum(axis=0, keepdims=True)

        a = full_sum(a_sc[...])
        b = full_sum(b_sc[...]) + eps
        c = full_sum(c_sc[...]) + eps
        dice = 2.0 * a / (b + c)
        loss_ref[...] = jnp.broadcast_to(1.0 - dice, loss_ref.shape)


def dice_loss_pallas(pred, target, weight=None, *, use_sigmoid=True, activate=True,
                     reduction="mean", loss_weight=1.0, eps=1e-3, avg_factor=None,
                     sub_rows=512, max_rows_per_step=4096):
    """JAX/Pallas equivalent of mmdet DiceLoss.forward (default ctor args)."""
    if activate and not use_sigmoid:
        # Matches the PyTorch module, which raises NotImplementedError here.
        raise NotImplementedError("softmax path is not implemented")

    n = pred.shape[0]
    pred2 = pred.reshape(n, -1)          # == torch .flatten(1)
    target2 = target.reshape(n, -1)
    assert target2.shape == pred2.shape
    d = pred2.shape[1]

    if target2.dtype == jnp.bool_:
        # i1 blocks are awkward on TPU; uint8 keeps 1 B/elem HBM traffic.
        target2 = target2.astype(jnp.uint8)
    binary_target = jnp.issubdtype(target2.dtype, jnp.integer)

    # Reshape to lane-dense (n, R, 128).  Free (pure reshape) when d % 128 == 0;
    # otherwise pad minimally to the next multiple of 128 (values are masked
    # in-kernel, so the pad constant does not matter).
    d128 = _round_up(d, 128)
    if d128 != d:
        pred2 = jnp.pad(pred2, ((0, 0), (0, d128 - d)))
        target2 = jnp.pad(target2, ((0, 0), (0, d128 - d)))
    rows = d128 // 128
    pred3 = pred2.reshape(n, rows, 128)
    target3 = target2.reshape(n, rows, 128)

    # Tiling: grid chunk = n_sub sub-tiles of `sub` rows; sub-tile temporaries
    # stay in vregs, so VMEM only holds the double-buffered input blocks.
    sub = int(min(sub_rows, _round_up(rows, 32)))
    n_sub = int(min(max(1, max_rows_per_step // sub), _cdiv(rows, sub)))
    s = sub * n_sub
    n_chunks = _cdiv(rows, s)
    needs_mask = (n_chunks * s * 128) != d

    # VMEM budget computed from the actual requirement (+50% headroom).
    pred_item = jnp.dtype(pred3.dtype).itemsize
    tgt_item = jnp.dtype(target3.dtype).itemsize
    vmem_needed = (2 * s * 128 * (pred_item + tgt_item)   # double-buffered inputs
                   + 2 * 8 * 128 * 4                      # output block
                   + 3 * 8 * 128 * 4                      # accumulators
                   + 8 * sub * 128 * 4)                   # bounded temporaries
    vmem_limit = int(min(max(vmem_needed * 3 // 2 + (4 << 20), 16 << 20), 100 << 20))

    kernel = functools.partial(
        _dice_kernel, eps=float(eps), activate=bool(activate), d=int(d),
        sub=sub, n_sub=n_sub, n_chunks=int(n_chunks),
        binary_target=bool(binary_target), needs_mask=bool(needs_mask))

    out = pl.pallas_call(
        kernel,
        out_shape=jax.ShapeDtypeStruct((n, 8, 128), jnp.float32),
        grid_spec=pltpu.PrefetchScalarGridSpec(
            num_scalar_prefetch=0,
            grid=(n, n_chunks),                            # reduction axis last
            in_specs=[
                pl.BlockSpec((1, s, 128), lambda b, k: (b, k, 0)),
                pl.BlockSpec((1, s, 128), lambda b, k: (b, k, 0)),
            ],
            out_specs=pl.BlockSpec((1, 8, 128), lambda b, k: (b, 0, 0)),
            scratch_shapes=[pltpu.VMEM((8, 128), jnp.float32) for _ in range(3)],
        ),
        compiler_params=pltpu.CompilerParams(
            dimension_semantics=("parallel", "arbitrary"),
            vmem_limit_bytes=vmem_limit,
        ),
    )(pred3, target3)

    loss = out[:, 0, 0]  # shape (n,)

    # weight_reduce_loss semantics (weight has shape (n,) if given)
    if weight is not None:
        assert weight.ndim == 1 and weight.shape[0] == n
        loss = loss * weight.astype(loss.dtype)
    if reduction == "mean":
        if avg_factor is None:
            loss = jnp.mean(loss)
        else:
            loss = jnp.sum(loss) / avg_factor
    elif reduction == "sum":
        assert avg_factor is None, "avg_factor not allowed with reduction='sum'"
        loss = jnp.sum(loss)
    elif reduction != "none":
        raise ValueError(f"bad reduction {reduction}")

    return loss_weight * loss


def _reference(pred, target, eps=1e-3, loss_weight=1.0):
    # Pure-JAX reference mirroring the PyTorch code (for sanity check).
    n = pred.shape[0]
    p = jax.nn.sigmoid(pred.reshape(n, -1).astype(jnp.float32))
    t = target.reshape(n, -1).astype(jnp.float32)
    a = jnp.sum(p * t, axis=1)
    b = jnp.sum(p * p, axis=1) + eps
    c = jnp.sum(t * t, axis=1) + eps
    loss = 1.0 - 2.0 * a / (b + c)
    return loss_weight * jnp.mean(loss)


if __name__ == "__main__":
    key = jax.random.PRNGKey(0)
    k1, k2, k3, k4 = jax.random.split(key, 4)

    # 1) Primary small case (n, C, H, W); d = 1024 -> free reshape, masked tail.
    pred = jax.random.normal(k1, (2, 4, 16, 16), dtype=jnp.float32)
    target = (jax.random.uniform(k2, (2, 4, 16, 16)) > 0.5).astype(jnp.float32)
    out = jax.block_until_ready(dice_loss_pallas(pred, target))
    ref = _reference(pred, target)
    assert jnp.allclose(out, ref, atol=1e-4, rtol=1e-4), (out, ref)

    # 2) Ragged d (3600, not multiple of 128), int32 binary targets,
    #    forced multi-chunk grid -> exercises masked last chunk + fori_loop.
    pred_r = jax.random.normal(k3, (2, 4, 30, 30), dtype=jnp.float32)
    target_r = (jax.random.uniform(k4, (2, 4, 30, 30)) > 0.5).astype(jnp.int32)
    out_r = jax.block_until_ready(
        dice_loss_pallas(pred_r, target_r, sub_rows=8, max_rows_per_step=16))
    ref_r = _reference(pred_r, target_r)
    assert jnp.allclose(out_r, ref_r, atol=1e-4, rtol=1e-4), (out_r, ref_r)

    # 3) Exactly-tiled case (d = 65536) -> fully unmasked fast path.
    pred_m = jax.random.normal(k1, (2, 8, 128, 64), dtype=jnp.float32)
    target_m = (jax.random.uniform(k2, (2, 8, 128, 64)) > 0.5).astype(jnp.float32)
    out_m = jax.block_until_ready(dice_loss_pallas(pred_m, target_m))
    ref_m = _reference(pred_m, target_m)
    assert jnp.allclose(out_m, ref_m, atol=1e-4, rtol=1e-4), (out_m, ref_m)

    print("KERNEL_OK")
</pallas_src>

<mosaic_0001>
module attributes {stable_mosaic.version = 11 : i64} {
  func.func @_dice_kernel(%arg0: i32, %arg1: i32, %arg2: memref<1x32x128xf32, #tpu.memory_space<vmem>>, %arg3: memref<1x32x128xf32, #tpu.memory_space<vmem>>, %arg4: memref<1x8x128xf32, #tpu.memory_space<vmem>>, %arg5: memref<8x128xf32, #tpu.memory_space<vmem>>, %arg6: memref<8x128xf32, #tpu.memory_space<vmem>>, %arg7: memref<8x128xf32, #tpu.memory_space<vmem>>) attributes {dimension_semantics = [#tpu.dimension_semantics<parallel>, #tpu.dimension_semantics<arbitrary>], iteration_bounds = array<i64: 2, 1>, scalar_prefetch = 0 : i64, scratch_operands = 3 : i64, tpu.core_type = #tpu.core_type<tc>, window_params = [{transform_indices = @transform_0, window_bounds = array<i64: 1, 32, 128>}, {transform_indices = @transform_1, window_bounds = array<i64: 1, 32, 128>}, {transform_indices = @transform_2, window_bounds = array<i64: 1, 8, 128>}]} {
    %c0_i32 = arith.constant 0 : i32
    %0 = arith.cmpi eq, %arg1, %c0_i32 : i32
    %1 = arith.extui %0 : i1 to i32
    %c0_i32_0 = arith.constant 0 : i32
    %2 = arith.cmpi ne, %1, %c0_i32_0 : i32
    scf.if %2 {
      %cst_29 = arith.constant 0.000000e+00 : f32
      %50 = vector.broadcast %cst_29 : f32 to vector<8x128xf32>
      %c0_30 = arith.constant 0 : index
      %c0_31 = arith.constant 0 : index
      %51 = vector.load %arg5[%c0_30, %c0_31] : memref<8x128xf32, #tpu.memory_space<vmem>>, vector<8x128xf32>
      tpu.vector_store %arg5[%c0_30, %c0_31], %50 {strides = array<i32>} : memref<8x128xf32, #tpu.memory_space<vmem>>, vector<8x128xf32>,
      %cst_32 = arith.constant 0.000000e+00 : f32
      %52 = vector.broadcast %cst_32 : f32 to vector<8x128xf32>
      %c0_33 = arith.constant 0 : index
      %c0_34 = arith.constant 0 : index
      %53 = vector.load %arg6[%c0_33, %c0_34] : memref<8x128xf32, #tpu.memory_space<vmem>>, vector<8x128xf32>
      tpu.vector_store %arg6[%c0_33, %c0_34], %52 {strides = array<i32>} : memref<8x128xf32, #tpu.memory_space<vmem>>, vector<8x128xf32>,
      %cst_35 = arith.constant 0.000000e+00 : f32
      %54 = vector.broadcast %cst_35 : f32 to vector<8x128xf32>
      %c0_36 = arith.constant 0 : index
      %c0_37 = arith.constant 0 : index
      %55 = vector.load %arg7[%c0_36, %c0_37] : memref<8x128xf32, #tpu.memory_space<vmem>>, vector<8x128xf32>
      tpu.vector_store %arg7[%c0_36, %c0_37], %54 {strides = array<i32>} : memref<8x128xf32, #tpu.memory_space<vmem>>, vector<8x128xf32>,
    } else {
    }
    %cst = arith.constant 0.000000e+00 : f32
    %3 = vector.broadcast %cst : f32 to vector<8x128xf32>
    %c0 = arith.constant 0 : index
    %c0_1 = arith.constant 0 : index
    %c0_2 = arith.constant 0 : index
    %4 = vector.load %arg2[%c0, %c0_1, %c0_2] : memref<1x32x128xf32, #tpu.memory_space<vmem>>, vector<1x32x128xf32>
    %5 = vector.shape_cast %4 : vector<1x32x128xf32> to vector<32x128xf32>
    %c0_3 = arith.constant 0 : index
    %c0_4 = arith.constant 0 : index
    %c0_5 = arith.constant 0 : index
    %6 = vector.load %arg3[%c0_3, %c0_4, %c0_5] : memref<1x32x128xf32, #tpu.memory_space<vmem>>, vector<1x32x128xf32>
    %7 = vector.shape_cast %6 : vector<1x32x128xf32> to vector<32x128xf32>
    %cst_6 = arith.constant 5.000000e-01 : f32
    %8 = vector.broadcast %cst_6 : f32 to vector<32x128xf32>
    %9 = arith.mulf %8, %5 : vector<32x128xf32>
    %10 = math.tanh %9 : vector<32x128xf32>
    %cst_7 = arith.constant 5.000000e-01 : f32
    %11 = vector.broadcast %cst_7 : f32 to vector<32x128xf32>
    %12 = arith.mulf %11, %10 : vector<32x128xf32>
    %cst_8 = arith.constant 5.000000e-01 : f32
    %13 = vector.broadcast %cst_8 : f32 to vector<32x128xf32>
    %14 = arith.addf %12, %13 : vector<32x128xf32>
    %c32_i32 = arith.constant 32 : i32
    %15 = arith.muli %arg1, %c32_i32 : i32
    %c0_i32_9 = arith.constant 0 : i32
    %16 = arith.addi %15, %c0_i32_9 : i32
    %17 = tpu.iota {dimensions = array<i32: 0>} : vector<32x128xi32>
    %18 = vector.broadcast %16 : i32 to vector<32x128xi32>
    %19 = arith.addi %18, %17 : vector<32x128xi32>
    %c8_i32 = arith.constant 8 : i32
    %20 = vector.broadcast %c8_i32 : i32 to vector<32x128xi32>
    %21 = arith.cmpi slt, %19, %20 : vector<32x128xi32>
    %cst_10 = arith.constant 0.000000e+00 : f32
    %22 = vector.broadcast %cst_10 : f32 to vector<32x128xf32>
    %23 = arith.select %21, %14, %22 : vector<32x128xi1>, vector<32x128xf32>
    %cst_11 = arith.constant 0.000000e+00 : f32
    %24 = vector.broadcast %cst_11 : f32 to vector<32x128xf32>
    %25 = arith.select %21, %7, %24 : vector<32x128xi1>, vector<32x128xf32>
    %26 = arith.mulf %23, %25 : vector<32x128xf32>
    %27 = vector.shape_cast %26 : vector<32x128xf32> to vector<4x8x128xf32>
    %cst_12 = arith.constant dense<0.000000e+00> : vector<8x128xf32>
    %28 = vector.multi_reduction <add>, %27, %cst_12 [0] : vector<4x8x128xf32> to vector<8x128xf32>
    %29 = arith.addf %3, %28 : vector<8x128xf32>
    %30 = arith.mulf %23, %23 : vector<32x128xf32>
    %31 = vector.shape_cast %30 : vector<32x128xf32> to vector<4x8x128xf32>
    %cst_13 = arith.constant dense<0.000000e+00> : vector<8x128xf32>
    %32 = vector.multi_reduction <add>, %31, %cst_13 [0] : vector<4x8x128xf32> to vector<8x128xf32>
    %33 = arith.addf %3, %32 : vector<8x128xf32>
    %34 = arith.mulf %25, %25 : vector<32x128xf32>
    %35 = vector.shape_cast %34 : vector<32x128xf32> to vector<4x8x128xf32>
    %cst_14 = arith.constant dense<0.000000e+00> : vector<8x128xf32>
    %36 = vector.multi_reduction <add>, %35, %cst_14 [0] : vector<4x8x128xf32> to vector<8x128xf32>
    %37 = arith.addf %3, %36 : vector<8x128xf32>
    %c0_15 = arith.constant 0 : index
    %c0_16 = arith.constant 0 : index
    %38 = vector.load %arg5[%c0_15, %c0_16] : memref<8x128xf32, #tpu.memory_space<vmem>>, vector<8x128xf32>
    %39 = arith.addf %38, %29 : vector<8x128xf32>
    %c0_17 = arith.constant 0 : index
    %c0_18 = arith.constant 0 : index
    %40 = vector.load %arg5[%c0_17, %c0_18] : memref<8x128xf32, #tpu.memory_space<vmem>>, vector<8x128xf32>
    tpu.vector_store %arg5[%c0_17, %c0_18], %39 {strides = array<i32>} : memref<8x128xf32, #tpu.memory_space<vmem>>, vector<8x128xf32>,
    %c0_19 = arith.constant 0 : index
    %c0_20 = arith.constant 0 : index
    %41 = vector.load %arg6[%c0_19, %c0_20] : memref<8x128xf32, #tpu.memory_space<vmem>>, vector<8x128xf32>
    %42 = arith.addf %41, %33 : vector<8x128xf32>
    %c0_21 = arith.constant 0 : index
    %c0_22 = arith.constant 0 : index
    %43 = vector.load %arg6[%c0_21, %c0_22] : memref<8x128xf32, #tpu.memory_space<vmem>>, vector<8x128xf32>
    tpu.vector_store %arg6[%c0_21, %c0_22], %42 {strides = array<i32>} : memref<8x128xf32, #tpu.memory_space<vmem>>, vector<8x128xf32>,
    %c0_23 = arith.constant 0 : index
    %c0_24 = arith.constant 0 : index
    %44 = vector.load %arg7[%c0_23, %c0_24] : memref<8x128xf32, #tpu.memory_space<vmem>>, vector<8x128xf32>
    %45 = arith.addf %44, %37 : vector<8x128xf32>
    %c0_25 = arith.constant 0 : index
    %c0_26 = arith.constant 0 : index
    %46 = vector.load %arg7[%c0_25, %c0_26] : memref<8x128xf32, #tpu.memory_space<vmem>>, vector<8x128xf32>
    tpu.vector_store %arg7[%c0_25, %c0_26], %45 {strides = array<i32>} : memref<8x128xf32, #tpu.memory_space<vmem>>, vector<8x128xf32>,
    %c0_i32_27 = arith.constant 0 : i32
    %47 = arith.cmpi eq, %arg1, %c0_i32_27 : i32
    %48 = arith.extui %47 : i1 to i32
    %c0_i32_28 = arith.constant 0 : i32
    %49 = arith.cmpi ne, %48, %c0_i32_28 : i32
    scf.if %49 {
      %c0_29 = arith.constant 0 : index
      %c0_30 = arith.constant 0 : index
      %50 = vector.load %arg5[%c0_29, %c0_30] : memref<8x128xf32, #tpu.memory_space<vmem>>, vector<8x128xf32>
      %cst_31 = arith.constant dense<0.000000e+00> : vector<8xf32>
      %51 = vector.multi_reduction <add>, %50, %cst_31 [1] : vector<8x128xf32> to vector<8xf32>
      %52 = vector.shape_cast %51 : vector<8xf32> to vector<8x1xf32>
      %cst_32 = arith.constant dense<0.000000e+00> : vector<1xf32>
      %53 = vector.multi_reduction <add>, %52, %cst_32 [0] : vector<8x1xf32> to vector<1xf32>
      %54 = vector.shape_cast %53 : vector<1xf32> to vector<1x1xf32>
      %c0_33 = arith.constant 0 : index
      %c0_34 = arith.constant 0 : index
      %55 = vector.load %arg6[%c0_33, %c0_34] : memref<8x128xf32, #tpu.memory_space<vmem>>, vector<8x128xf32>
      %cst_35 = arith.constant dense<0.000000e+00> : vector<8xf32>
      %56 = vector.multi_reduction <add>, %55, %cst_35 [1] : vector<8x128xf32> to vector<8xf32>
      %57 = vector.shape_cast %56 : vector<8xf32> to vector<8x1xf32>
      %cst_36 = arith.constant dense<0.000000e+00> : vector<1xf32>
      %58 = vector.multi_reduction <add>, %57, %cst_36 [0] : vector<8x1xf32> to vector<1xf32>
      %59 = vector.shape_cast %58 : vector<1xf32> to vector<1x1xf32>
      %cst_37 = arith.constant 1.000000e-03 : f32
      %60 = vector.broadcast %cst_37 : f32 to vector<1x1xf32>
      %61 = arith.addf %59, %60 : vector<1x1xf32>
      %c0_38 = arith.constant 0 : index
      %c0_39 = arith.constant 0 : index
      %62 = vector.load %arg7[%c0_38, %c0_39] : memref<8x128xf32, #tpu.memory_space<vmem>>, vector<8x128xf32>
      %cst_40 = arith.constant dense<0.000000e+00> : vector<8xf32>
      %63 = vector.multi_reduction <add>, %62, %cst_40 [1] : vector<8x128xf32> to vector<8xf32>
      %64 = vector.shape_cast %63 : vector<8xf32> to vector<8x1xf32>
      %cst_41 = arith.constant dense<0.000000e+00> : vector<1xf32>
      %65 = vector.multi_reduction <add>, %64, %cst_41 [0] : vector<8x1xf32> to vector<1xf32>
      %66 = vector.shape_cast %65 : vector<1xf32> to vector<1x1xf32>
      %cst_42 = arith.constant 1.000000e-03 : f32
      %67 = vector.broadcast %cst_42 : f32 to vector<1x1xf32>
      %68 = arith.addf %66, %67 : vector<1x1xf32>
      %cst_43 = arith.constant 2.000000e+00 : f32
      %69 = vector.broadcast %cst_43 : f32 to vector<1x1xf32>
      %70 = arith.mulf %69, %54 : vector<1x1xf32>
      %71 = arith.addf %61, %68 : vector<1x1xf32>
      %72 = arith.divf %70, %71 : vector<1x1xf32>
      %cst_44 = arith.constant 1.000000e+00 : f32
      %73 = vector.broadcast %cst_44 : f32 to vector<1x1xf32>
      %74 = arith.subf %73, %72 : vector<1x1xf32>
      %75 = vector.shape_cast %74 : vector<1x1xf32> to vector<1x1x1xf32>
      %76 = vector.broadcast %75 : vector<1x1x1xf32> to vector<1x8x128xf32>
      %c0_45 = arith.constant 0 : index
      %c0_46 = arith.constant 0 : index
      %c0_47 = arith.constant 0 : index
      %77 = vector.load %arg4[%c0_45, %c0_46, %c0_47] : memref<1x8x128xf32, #tpu.memory_space<vmem>>, vector<1x8x128xf32>
      tpu.vector_store %arg4[%c0_45, %c0_46, %c0_47], %76 {strides = array<i32>} : memref<1x8x128xf32, #tpu.memory_space<vmem>>, vector<1x8x128xf32>,
    } else {
    }
    return
  }
  func.func @transform_0(%arg0: i32, %arg1: i32) -> (i32, i32, i32) {
    %c0_i32 = arith.constant 0 : i32
    %c0_i32_0 = arith.constant 0 : i32
    return %arg0, %arg1, %c0_i32 : i32, i32, i32
  }
  func.func @transform_1(%arg0: i32, %arg1: i32) -> (i32, i32, i32) {
    %c0_i32 = arith.constant 0 : i32
    %c0_i32_0 = arith.constant 0 : i32
    return %arg0, %arg1, %c0_i32 : i32, i32, i32
  }
  func.func @transform_2(%arg0: i32, %arg1: i32) -> (i32, i32, i32) {
    %c0_i32 = arith.constant 0 : i32
    %c0_i32_0 = arith.constant 0 : i32
    %c0_i32_1 = arith.constant 0 : i32
    return %arg0, %c0_i32, %c0_i32_0 : i32, i32, i32
  }
}

</mosaic_0001>

<llo_original>
// kernel: tpu_custom_call.1
$region0: #{tpu_custom_call.1}
  #allocation0 [shape = 'u32[]', space=smem, size = 0x4, offset = 0x4, fixed_abs, tag = 'smem constant byte address 0x4 - core index']
  #allocation1 [shape = 'u32[144,128]{1,0:T(1,128)}', space=vmem, size = 0x12000, scoped, tag = 'internal scratch']
  #allocation2 [shape = 'f32[8,128]{1,0:T(8,128)}', space=vmem, size = 0x1000, scoped, tag = 'scratch operand']
  #allocation3 [shape = 'f32[8,128]{1,0:T(8,128)}', space=vmem, size = 0x1000, scoped, tag = 'scratch operand']
  #allocation4 [shape = 'f32[8,128]{1,0:T(8,128)}', space=vmem, size = 0x1000, scoped, tag = 'scratch operand']
  %s0 = inlined_call_operand.hbm [shape: f32[2,8,128], index: 0, kind: input, shape index: {}]
  %s1 = inlined_call_operand.hbm [shape: f32[2,8,128], index: 1, kind: input, shape index: {}]
  %s2 = inlined_call_operand.hbm [shape: f32[2,8,128], index: 2, kind: output, shape index: {}]
  %s3 = sld [smem:[#allocation0]]
  $region57: #{tpu_custom_call.1} parent=0
    _
  %s5 = ssub.s32 1, %s3
  %s6 = scalar_select 0, %s5, %s3
  $region1: #{tpu_custom_call.1} parent=0
    #allocation5 [shape = 'u8[32768]{0}', space=vmem, size = 0x8000, scoped, tag = 'input window, operand 0']
    #allocation6 [shape = 's32[2]{0}', space=sflag, size = 0x8, scoped, tag = 'scoped memory for tpu_custom_call.1']
    #allocation7 [shape = 's32[2]{0}', space=sflag, size = 0x8, scoped, tag = 'scoped memory for tpu_custom_call.1']
    #allocation8 [shape = 'u8[32768]{0}', space=vmem, size = 0x8000, scoped, tag = 'input window, operand 1']
    #allocation9 [shape = 's32[2]{0}', space=sflag, size = 0x8, scoped, tag = 'scoped memory for tpu_custom_call.1']
    #allocation10 [shape = 'u8[8192]{0}', space=vmem, size = 0x2000, scoped, tag = 'output window, operand 0']
    %7 = vsyncpa [#allocation6], 0
    %s8 = scalar_lea.sflag [#allocation6], 1
    %9 = vsyncpa %s8, 0
    %10 = vsyncpa [#allocation9], 0
    %s11 = scalar_lea.sflag [#allocation9], 1
    %12 = vsyncpa %s11, 0
    %13 = vsyncpa [#allocation7], 0
    %s14 = scalar_lea.sflag [#allocation7], 1
    %15 = vsyncpa %s14, 0
    loop: start=0, step=1, limit=4
    $region2: #{tpu_custom_call.1} parent=1 // loop_pre_header
      _
    $region3: #{tpu_custom_call.1} parent=1 // loop_header
      %s17 = sphi 0, %s21
      %p18 = scmp.ge.s32.totalorder %s17, 4
      %s24 = sphi 0, %s36
      %s25 = sphi 0, %s32
      %s26 = sphi 0, %s24
      %s27 = sphi 0, %s25
      %s28 = sphi 0, %s26
      %s29 = sphi 0, %s27
      %s41 = sphi 0, %s43
      %s44 = sphi 0, %s41
      %s45 = sphi 0, %s44
      %s61 = sphi 0, %s45
      %s69 = sphi 0, %s71
      %s72 = sphi 0, %s69
      %s73 = sphi 0, %s72
      %s89 = sphi 0, %s73
      %s95 = sphi 0, %s97
      %s98 = sphi 0, %s95
      %s99 = sphi 0, %s98
      %s115 = sphi 0, %s99
    $region4: #{tpu_custom_call.1} parent=1 // loop_header_branch
      %20 = sbr.rel (%p18) target = $region8
    $region5: #{tpu_custom_call.1} parent=1 // loop_body
      %s22 = ssub.s32 %s17, 1
      %s23 = ssub.s32 %s17, 2
      %s30 = sadd.s32 1, %s25
      %p31 = scmp.ge.s32.totalorder %s30, 1
      %s32 = scalar_select %p31, 0, %s30
      %s33 = sadd.s32 1, %s24
      %s34 = scalar_select %p31, %s33, %s24
      %p35 = scmp.ge.s32.totalorder %s34, 2
      %s36 = scalar_select %p35, 0, %s34
      %s37 = ssub.s32 %s24, %s36
      %s38 = ssub.s32 %s25, %s32
      %s39 = sor.u32 %s37, %s38
      %p40 = scmp.eq.s32.totalorder %s39, 0
      %s42 = sadd.s32 %s41, 1
      %s43 = scalar_select %p40, %s41, %s42
      %p46 = pneg %p40
      %p47 = scmp.eq.s32.totalorder %s17, 1
      %p48 = por %p46, %p47
      %p49 = scmp.ne.s32.totalorder %s41, %s44
      %p50 = scmp.eq.s32.totalorder %s17, 0
      %p51 = por %p49, %p50
      %p52 = scmp.ne.s32.totalorder %s41, %s44
      %p53 = scmp.eq.s32.totalorder %s22, 1
      %p54 = por %p52, %p53
      %p55 = scmp.ne.s32.totalorder %s44, %s45
      %p56 = scmp.eq.s32.totalorder %s22, 0
      %p57 = por %p55, %p56
      %p58 = scmp.ne.s32.totalorder %s44, %s45
      %p59 = scmp.eq.s32.totalorder %s23, 1
      %p60 = por %p58, %p59
      %p62 = scmp.ne.s32.totalorder %s45, %s61
      %p63 = scmp.eq.s32.totalorder %s23, 0
      %p64 = por %p62, %p63
      %s65 = ssub.s32 %s24, %s36
      %s66 = ssub.s32 %s25, %s32
      %s67 = sor.u32 %s65, %s66
      %p68 = scmp.eq.s32.totalorder %s67, 0
      %s70 = sadd.s32 %s69, 1
      %s71 = scalar_select %p68, %s69, %s70
      %p74 = pneg %p68
      %p75 = scmp.eq.s32.totalorder %s17, 1
      %p76 = por %p74, %p75
      %p77 = scmp.ne.s32.totalorder %s69, %s72
      %p78 = scmp.eq.s32.totalorder %s17, 0
      %p79 = por %p77, %p78
      %p80 = scmp.ne.s32.totalorder %s69, %s72
      %p81 = scmp.eq.s32.totalorder %s22, 1
      %p82 = por %p80, %p81
      %p83 = scmp.ne.s32.totalorder %s72, %s73
      %p84 = scmp.eq.s32.totalorder %s22, 0
      %p85 = por %p83, %p84
      %p86 = scmp.ne.s32.totalorder %s72, %s73
      %p87 = scmp.eq.s32.totalorder %s23, 1
      %p88 = por %p86, %p87
      %p90 = scmp.ne.s32.totalorder %s73, %s89
      %p91 = scmp.eq.s32.totalorder %s23, 0
      %p92 = por %p90, %p91
      %s93 = ssub.s32 %s24, %s36
      %p94 = scmp.eq.s32.totalorder %s93, 0
      %s96 = sadd.s32 %s95, 1
      %s97 = scalar_select %p94, %s95, %s96
      %p100 = pneg %p94
      %p101 = scmp.eq.s32.totalorder %s17, 1
      %p102 = por %p100, %p101
      %p103 = scmp.ne.s32.totalorder %s95, %s98
      %p104 = scmp.eq.s32.totalorder %s17, 0
      %p105 = por %p103, %p104
      %p106 = scmp.ne.s32.totalorder %s95, %s98
      %p107 = scmp.eq.s32.totalorder %s22, 1
      %p108 = por %p106, %p107
      %p109 = scmp.ne.s32.totalorder %s98, %s99
      %p110 = scmp.eq.s32.totalorder %s22, 0
      %p111 = por %p109, %p110
      %p112 = scmp.ne.s32.totalorder %s98, %s99
      %p113 = scmp.eq.s32.totalorder %s23, 1
      %p114 = por %p112, %p113
      %p116 = scmp.ne.s32.totalorder %s99, %s115
      %p117 = scmp.eq.s32.totalorder %s23, 0
      %p118 = por %p116, %p117
      %p119 = scmp.le.s32.totalorder 1, %s17
      %p120 = scmp.lt.s32.totalorder %s17, 3
      %p121 = pnand %p119, %p120
      %p122 = pneg %p121
      // Predicated region
      $region9: #{tpu_custom_call.1} parent=5 // pred_check
        _
      $region10: #{tpu_custom_call.1} parent=5 // pred_check_branch
        %124 = sbr.rel (%p121) target = $region12
      $region11: #{tpu_custom_call.1} parent=5 // pred_region
        %s125 = ssub.s32 %s17, 1
      $region12: #{tpu_custom_call.1} parent=5 // pred_fallthru
        _
      %p126 = scmp.lt.s32.totalorder %s17, 2
      // Predicated region
      $region13: #{tpu_custom_call.1} parent=5 // pred_check
        %p127 = pneg %p126
      $region14: #{tpu_custom_call.1} parent=5 // pred_check_branch
        %129 = sbr.rel (%p127) target = $region16
      $region15: #{tpu_custom_call.1} parent=5 // pred_region
        // Predicated region
        $region17: #{tpu_custom_call.1} parent=15 // pred_check
          %p130 = pneg %p51
        $region18: #{tpu_custom_call.1} parent=15 // pred_check_branch
          %132 = sbr.rel (%p130) target = $region20
        $region19: #{tpu_custom_call.1} parent=15 // pred_region
          %s133 = sand.u32 %s41, 1
          %s134 = scalar_lea.sflag [#allocation6], %s133
          %s135 = sand.u32 %s41, 1
          %s136 = smul.addr %s135, 32
          %s137 = scalar_lea.vmem [#allocation5], %s136
          %s138 = smul.u32 4, %s25
          %s139 = ssub.s32 1, %s138
          %s140 = smul.u32 128, %s139
          %s142 = ssub.s32 512, %s140
          %143 = vsyncadd %s134, %s142
          %p144 = scmp.ne.s32.totalorder 0, %s140
          %s145 = sadd.s32 %s138, %s24
          %s146 = smul.addr %s145, 128
          %s147 = scalar_lea.hbm %s0, %s146
          %s148 = smul.u32 8, %s139
          %s149 = sshll.u32 %s137, 4
          %s150 = int_to_ptr.vmem [resolvable:$true] %s149
          %s151 = sshll.u32 %s148, 4
          %155 = dma.hbm_to_vmem [thread:$0]  (%p144), %s147, %s151, %s150, %s134, 128, 128, 8
        $region20: #{tpu_custom_call.1} parent=15 // pred_fallthru
          _
        // Predicated region
        $region21: #{tpu_custom_call.1} parent=15 // pred_check
          %p156 = pneg %p79
        $region22: #{tpu_custom_call.1} parent=15 // pred_check_branch
          %158 = sbr.rel (%p156) target = $region24
        $region23: #{tpu_custom_call.1} parent=15 // pred_region
          %s159 = sand.u32 %s69, 1
          %s160 = scalar_lea.sflag [#allocation9], %s159
          %s161 = sand.u32 %s69, 1
          %s162 = smul.addr %s161, 32
          %s163 = scalar_lea.vmem [#allocation8], %s162
          %s164 = smul.u32 4, %s25
          %s165 = ssub.s32 1, %s164
          %s166 = smul.u32 128, %s165
          %s168 = ssub.s32 512, %s166
          %169 = vsyncadd %s160, %s168
          %p170 = scmp.ne.s32.totalorder 0, %s166
          %s171 = sadd.s32 %s164, %s24
          %s172 = smul.addr %s171, 128
          %s173 = scalar_lea.hbm %s1, %s172
          %s174 = smul.u32 8, %s165
          %s175 = sshll.u32 %s163, 4
          %s176 = int_to_ptr.vmem [resolvable:$true] %s175
          %s177 = sshll.u32 %s174, 4
          %181 = dma.hbm_to_vmem [thread:$0]  (%p170), %s173, %s177, %s176, %s160, 128, 128, 8
        $region24: #{tpu_custom_call.1} parent=15 // pred_fallthru
          _
      $region16: #{tpu_custom_call.1} parent=5 // pred_fallthru
        _
      %p182 = scmp.le.s32.totalorder 1, %s17
      %p183 = scmp.lt.s32.totalorder %s17, 3
      %p184 = pnand %p182, %p183
      %p185 = pneg %p184
      // Predicated region
      $region25: #{tpu_custom_call.1} parent=5 // pred_check
        _
      $region26: #{tpu_custom_call.1} parent=5 // pred_check_branch
        %187 = sbr.rel (%p184) target = $region28
      $region27: #{tpu_custom_call.1} parent=5 // pred_region
        %s188 = ssub.s32 %s17, 1
        %s189 = sand.u32 %s44, 1
        %s190 = scalar_lea.sflag [#allocation6], %s189
        %s191 = sand.u32 %s44, 1
        %s192 = smul.addr %s191, 32
        %s193 = scalar_lea.vmem [#allocation5], %s192
        // Predicated region
        $region29: #{tpu_custom_call.1} parent=27 // pred_check
          %p194 = pneg %p57
        $region30: #{tpu_custom_call.1} parent=27 // pred_check_branch
          %196 = sbr.rel (%p194) target = $region32
        $region31: #{tpu_custom_call.1} parent=27 // pred_region
          %197 = dma.done %s190, 512
        $region32: #{tpu_custom_call.1} parent=27 // pred_fallthru
          _
        %s198 = sand.u32 %s72, 1
        %s199 = scalar_lea.sflag [#allocation9], %s198
        %s200 = sand.u32 %s72, 1
        %s201 = smul.addr %s200, 32
        %s202 = scalar_lea.vmem [#allocation8], %s201
        // Predicated region
        $region33: #{tpu_custom_call.1} parent=27 // pred_check
          %p203 = pneg %p85
        $region34: #{tpu_custom_call.1} parent=27 // pred_check_branch
          %205 = sbr.rel (%p203) target = $region36
        $region35: #{tpu_custom_call.1} parent=27 // pred_region
          %206 = dma.done %s199, 512
        $region36: #{tpu_custom_call.1} parent=27 // pred_fallthru
          _
        %s207 = sand.u32 %s44, 1
        %s208 = scalar_lea.sflag [#allocation6], %s207
        %s209 = sand.u32 %s44, 1
        %s210 = smul.addr %s209, 32
        %s211 = scalar_lea.vmem [#allocation5], %s210
        %p212 = pneg %p57
        %p213 = pneg %p54
        %s214 = sand.u32 %s72, 1
        %s215 = scalar_lea.sflag [#allocation9], %s214
        %s216 = sand.u32 %s72, 1
        %s217 = smul.addr %s216, 32
        %s218 = scalar_lea.vmem [#allocation8], %s217
        %p219 = pneg %p85
        %p220 = pneg %p82
        %p221 = pneg %p111
        %p222 = pneg %p108
        %s223 = sand.u32 %s98, 1
        %s224 = scalar_lea.sflag [#allocation7], %s223
        %s225 = sand.u32 %s98, 1
        %s226 = smul.addr %s225, 8
        %s227 = scalar_lea.vmem [#allocation10], %s226
        %s228 = smul.u32 4, %s27
        %s229 = ssub.s32 1, %s228
        %s230 = smul.u32 128, %s229
        %s231 = smul.u32 4, %s27
        %s232 = ssub.s32 1, %s231
        %s233 = smul.u32 128, %s232
        %p234 = scmp.eq.s32.totalorder %s27, 0
        // Predicated region
        $region37: #{tpu_custom_call.1} parent=27 // pred_check
          %p235 = pneg %p234
        $region38: #{tpu_custom_call.1} parent=27 // pred_check_branch
          %237 = sbr.rel (%p235) target = $region40
        $region39: #{tpu_custom_call.1} parent=27 // pred_region
          %238 = vst [vmem:[#allocation2] sm:$0xff] 0.0
          %239 = vst [vmem:[#allocation3] sm:$0xff] 0.0
          %240 = vst [vmem:[#allocation4] sm:$0xff] 0.0
        $region40: #{tpu_custom_call.1} parent=27 // pred_fallthru
          _
        %v241 = vld [vmem:[%s193] sm:$0xff]
        %v242 = vld [vmem:[%s193 + $0x8] sm:$0xff]
        %v243 = vld [vmem:[%s193 + $0x10] sm:$0xff]
        %v244 = vld [vmem:[%s193 + $0x18] sm:$0xff]
        %v245 = vld [vmem:[%s202] sm:$0xff]
        %v246 = vld [vmem:[%s202 + $0x8] sm:$0xff]
        %v247 = vld [vmem:[%s202 + $0x10] sm:$0xff]
        %v248 = vld [vmem:[%s202 + $0x18] sm:$0xff]
        %v249 = vmul.f32 %v241, 0.5
        %v250 = vmul.f32 %v242, 0.5
        %v251 = vmul.f32 %v243, 0.5
        %v252 = vmul.f32 %v244, 0.5
        %v253 = vtanh.pop %v249
        %v254 = vtanh.pop %v250
        %v255 = vtanh.pop %v251
        %v256 = vtanh.pop %v252
        %v257 = vmul.f32 %v253, 0.5
        %v258 = vmul.f32 %v254, 0.5
        %v259 = vmul.f32 %v255, 0.5
        %v260 = vmul.f32 %v256, 0.5
        %v261 = vadd.f32 %v257, 0.5
        %v262 = vadd.f32 %v258, 0.5
        %v263 = vadd.f32 %v259, 0.5
        %v264 = vadd.f32 %v260, 0.5
        %s265 = smul.u32 %s27, 32
        %v266 = vlaneseq
        %v267 = vshrl.u32 %v266, 7
        %v268 = vadd.s32 %v267, 8
        %v269 = vadd.s32 %v267, 16
        %v270 = vadd.s32 %v267, 24
        %v271 = vstv %s265
        %v272 = vadd.s32 %v271, %v267
        %v273 = vadd.s32 %v271, %v268
        %v274 = vadd.s32 %v271, %v269
        %v275 = vadd.s32 %v271, %v270
        %vm276 = vcmp.lt.s32.totalorder %v272, 8
        %vm277 = vcmp.lt.s32.totalorder %v273, 8
        %vm278 = vcmp.lt.s32.totalorder %v274, 8
        %vm279 = vcmp.lt.s32.totalorder %v275, 8
        %v280 = vsel %vm276, %v261, 0.0
        %v281 = vsel %vm277, %v262, 0.0
        %v282 = vsel %vm278, %v263, 0.0
        %v283 = vsel %vm279, %v264, 0.0
        %v284 = vsel %vm276, %v245, 0.0
        %v285 = vsel %vm277, %v246, 0.0
        %v286 = vsel %vm278, %v247, 0.0
        %v287 = vsel %vm279, %v248, 0.0
        %v288 = vmul.f32 %v280, %v284
        %v289 = vmul.f32 %v281, %v285
        %v290 = vmul.f32 %v282, %v286
        %v291 = vmul.f32 %v283, %v287
        %v292 = vadd.f32 %v288, %v289
        %v293 = vadd.f32 %v292, %v290
        %v294 = vadd.f32 %v293, %v291
        %v295 = vadd.f32 %v294, 0.0
        %v296 = vmul.f32 %v280, %v280
        %v297 = vmul.f32 %v281, %v281
        %v298 = vmul.f32 %v282, %v282
        %v299 = vmul.f32 %v283, %v283
        %v300 = vadd.f32 %v296, %v297
        %v301 = vadd.f32 %v300, %v298
        %v302 = vadd.f32 %v301, %v299
        %v303 = vadd.f32 %v302, 0.0
        %v304 = vmul.f32 %v284, %v284
        %v305 = vmul.f32 %v285, %v285
        %v306 = vmul.f32 %v286, %v286
        %v307 = vmul.f32 %v287, %v287
        %v308 = vadd.f32 %v304, %v305
        %v309 = vadd.f32 %v308, %v306
        %v310 = vadd.f32 %v309, %v307
        %v311 = vadd.f32 %v310, 0.0
        %v312 = vld [vmem:[#allocation2] sm:$0xff]
        %v313 = vadd.f32 %v312, %v295
        %314 = vst [vmem:[#allocation2] sm:$0xff] %v313
        %v315 = vld [vmem:[#allocation3] sm:$0xff]
        %v316 = vadd.f32 %v315, %v303
        %317 = vst [vmem:[#allocation3] sm:$0xff] %v316
        %v318 = vld [vmem:[#allocation4] sm:$0xff]
        %v319 = vadd.f32 %v318, %v311
        %320 = vst [vmem:[#allocation4] sm:$0xff] %v319
        // Predicated region
        $region41: #{tpu_custom_call.1} parent=27 // pred_check
          %p321 = pneg %p234
        $region42: #{tpu_custom_call.1} parent=27 // pred_check_branch
          %323 = sbr.rel (%p321) target = $region44
        $region43: #{tpu_custom_call.1} parent=27 // pred_region
          %v324 = vld [vmem:[#allocation2] sm:$0xff]
          %325 = vadd.xlane.f32.xlu0 %v324
          %v326 = vpop.xlane.xlu0 %325
          %v327 = vrot.slane %v326, 4
          %v328 = vadd.f32 %v326, %v327
          %v329 = vrot.slane %v328, 2
          %v330 = vadd.f32 %v328, %v329
          %v331 = vrot.slane %v330, 1
          %v332 = vadd.f32 %v330, %v331
          %v333 = vld [vmem:[#allocation3] sm:$0xff]
          %334 = vadd.xlane.f32.xlu0 %v333
          %v335 = vpop.xlane.xlu0 %334
          %v336 = vrot.slane %v335, 4
          %v337 = vadd.f32 %v335, %v336
          %v338 = vrot.slane %v337, 2
          %v339 = vadd.f32 %v337, %v338
          %v340 = vrot.slane %v339, 1
          %v341 = vadd.f32 %v339, %v340
          %v342 = vadd.f32 %v341, 0.001
          %v343 = vld [vmem:[#allocation4] sm:$0xff]
          %344 = vadd.xlane.f32.xlu0 %v343
          %v345 = vpop.xlane.xlu0 %344
          %v346 = vrot.slane %v345, 4
          %v347 = vadd.f32 %v345, %v346
          %v348 = vrot.slane %v347, 2
          %v349 = vadd.f32 %v347, %v348
          %v350 = vrot.slane %v349, 1
          %v351 = vadd.f32 %v349, %v350
          %v352 = vadd.f32 %v351, 0.001
          %v353 = vmul.f32 %v332, 2.0
          %v354 = vadd.f32 %v342, %v352
          %v355 = vrcp.pop %v354
          %v356 = vmul.f32 %v353, %v355
          %v357 = vsub.f32 1.0, %v356
          %358 = vst [vmem:[%s227] sm:$0xff] %v357
        $region44: #{tpu_custom_call.1} parent=27 // pred_fallthru
          _
        %s359 = sand.u32 %s98, 1
        %s360 = scalar_lea.sflag [#allocation7], %s359
        %s361 = sand.u32 %s98, 1
        %s362 = smul.addr %s361, 8
        %s363 = scalar_lea.vmem [#allocation10], %s362
        // Predicated region
        $region45: #{tpu_custom_call.1} parent=27 // pred_check
          %p364 = pneg %p108
        $region46: #{tpu_custom_call.1} parent=27 // pred_check_branch
          %366 = sbr.rel (%p364) target = $region48
        $region47: #{tpu_custom_call.1} parent=27 // pred_region
          %s368 = ssub.s32 128, 128
          %369 = vsyncadd %s360, %s368
          %s370 = smul.addr %s26, 128
          %s371 = scalar_lea.hbm %s2, %s370
          %s373 = sshll.u32 %s363, 4
          %s374 = int_to_ptr.vmem [resolvable:$true] %s373
          %376 = dma.vmem_to_hbm [thread:$0]  %s374, 128, %s371, %s360
        $region48: #{tpu_custom_call.1} parent=27 // pred_fallthru
          _
      $region28: #{tpu_custom_call.1} parent=5 // pred_fallthru
        _
      %p377 = scmp.le.s32.totalorder 2, %s17
      // Predicated region
      $region49: #{tpu_custom_call.1} parent=5 // pred_check
        %p378 = pneg %p377
      $region50: #{tpu_custom_call.1} parent=5 // pred_check_branch
        %380 = sbr.rel (%p378) target = $region52
      $region51: #{tpu_custom_call.1} parent=5 // pred_region
        %s381 = ssub.s32 %s17, 2
        // Predicated region
        $region53: #{tpu_custom_call.1} parent=51 // pred_check
          %p382 = pneg %p114
        $region54: #{tpu_custom_call.1} parent=51 // pred_check_branch
          %384 = sbr.rel (%p382) target = $region56
        $region55: #{tpu_custom_call.1} parent=51 // pred_region
          %s385 = sand.u32 %s99, 1
          %s386 = scalar_lea.sflag [#allocation7], %s385
          %s387 = sand.u32 %s99, 1
          %s388 = smul.addr %s387, 8
          %s389 = scalar_lea.vmem [#allocation10], %s388
          %390 = dma.done %s386, 128
        $region56: #{tpu_custom_call.1} parent=51 // pred_fallthru
          _
      $region52: #{tpu_custom_call.1} parent=5 // pred_fallthru
        _
    $region6: #{tpu_custom_call.1} parent=1 // loop_footer
      %s21 = sadd.s32 1, %s17
    $region7: #{tpu_custom_call.1} parent=1 // loop_footer_branch
      %16 = sbr.rel target = $region3
    $region8: #{tpu_custom_call.1} parent=1 // loop_exit
      _
    %391 = vsyncpa [#allocation6], 1
    %s392 = scalar_lea.sflag [#allocation6], 1
    %393 = vsyncpa %s392, 1
    %394 = vsyncpa [#allocation9], 1
    %s395 = scalar_lea.sflag [#allocation9], 1
    %396 = vsyncpa %s395, 1
    %397 = vsyncpa [#allocation7], 1
    %s398 = scalar_lea.sflag [#allocation7], 1
    %399 = vsyncpa %s398, 1

</llo_original>
